<compile_context>
chip_gen: v7x
topology: tpu7x:2x2x1
jax: 0.10.0
libtpu: 0.0.40
codegen_flags: <defaults>
</compile_context>

<pallas_src>
import jax
import jax.numpy as jnp
import numpy as np
from jax.experimental import pallas as pl
from jax.experimental.pallas import tpu as pltpu

_LANE = 128


def _round_up(x, m):
    return ((x + m - 1) // m) * m


def _round_down(x, m):
    return (x // m) * m


def _sublane(itemsize):
    # Rows pack along sublanes: f32 -> 8, bf16 -> 16, int8/fp8 -> 32.
    return max(8, 32 // max(1, itemsize))


def _generation_params():
    """Returns (target output bytes per grid step, VMEM working-set budget)."""
    kind = ""
    try:
        kind = (getattr(jax.devices()[0], "device_kind", "") or "").lower()
    except Exception:
        pass
    if "v7" in kind or "tpu7" in kind:
        return 12 << 20, 48 << 20      # 64 MiB physical VMEM per TC, 3.2 TB/s HBM
    if "v6" in kind:
        return 8 << 20, 64 << 20       # 128 MiB physical VMEM, ~1.4 TB/s HBM
    if "v5 lite" in kind or "v5e" in kind or "v5lite" in kind:
        return 4 << 20, 48 << 20       # ~0.82 TB/s HBM; larger tiles don't pay
    return 8 << 20, 48 << 20           # unknown generation: conservative


def _padded_footprint_bytes(tb, n1, n2, n_out, itemsize, sublane):
    """Conservative double-buffered VMEM footprint using padded (sublane, lane) sizes."""
    tb_p = _round_up(tb, sublane)
    n1_p = _round_up(n1, _LANE)
    n2_p = _round_up(n2, _LANE)
    no_p = _round_up(n_out, _LANE)
    in_bytes = 2 * tb_p * (n1_p + n2_p) * itemsize                       # 2x buffered inputs
    out_bytes = 2 * tb_p * no_p * itemsize                               # 2x buffered output
    acc_bytes = 2 * tb_p * no_p * 4                                      # f32 matmul results
    s_bytes = 2 * (_round_up(n1, sublane) + _round_up(n2, sublane)) * no_p * itemsize
    return in_bytes + out_bytes + acc_bytes + s_bytes


def _choose_batch_tile(batch, n1, n2, n_out, itemsize, sublane,
                       target_out_bytes, vmem_budget):
    no_p = _round_up(n_out, _LANE)
    tb = max(sublane,
             _round_down(target_out_bytes // max(1, no_p * itemsize), sublane))
    if batch >= 2 * sublane:
        # Keep >=2 grid blocks so v7x can shard the batch axis across its 2 TCs.
        tb = min(tb, max(sublane, _round_down(batch // 2, sublane)))
    if tb >= batch:
        tb = batch                     # single full block (== array dim, always legal)
    while tb > sublane and _padded_footprint_bytes(
            tb, n1, n2, n_out, itemsize, sublane) > vmem_budget:
        tb = max(sublane, _round_down(tb // 2, sublane))
    return tb


def _expansion_matrices(n1, n2, dtype):
    """0/1 matrices mapping [d1 | d2] onto the flattened cross-product row."""
    cols = np.arange(n1 * n2)
    s1 = (np.arange(n1)[:, None] == (cols % n1)[None, :]).astype(np.float32)
    s2 = (np.arange(n2)[:, None] == (cols // n1)[None, :]).astype(np.float32)
    return jnp.asarray(s1, dtype=dtype), jnp.asarray(s2, dtype=dtype)


def _product_vector_kernel(d1_ref, d2_ref, s1_ref, s2_ref, out_ref):
    # d1: (TB, N1), d2: (TB, N2), s1: (N1, N1*N2), s2: (N2, N1*N2)
    # out[b, i*N1 + j] = d1[b, j] + d2[b, i], built lane-dense on the MXU.
    acc = jnp.dot(d1_ref[...], s1_ref[...],
                  preferred_element_type=jnp.float32,
                  precision=jax.lax.Precision.HIGHEST)
    acc = acc + jnp.dot(d2_ref[...], s2_ref[...],
                        preferred_element_type=jnp.float32,
                        precision=jax.lax.Precision.HIGHEST)
    out_ref[...] = acc.astype(out_ref.dtype)


def product_vector_forward(dists1, dists2):
    """Cross-product (outer sum in log-space) of two distribution vectors.

    dists1: (B, N1), dists2: (B, N2)  ->  (B, N1 * N2)
    out[b, i*N1 + j] = dists1[b, j] + dists2[b, i]   (matches torch .view order)
    """
    B, N1 = dists1.shape
    B2, N2 = dists2.shape
    assert B == B2, "batch mismatch"
    assert dists1.dtype == dists2.dtype, "dtype mismatch"

    n_out = N1 * N2
    dtype = dists1.dtype
    itemsize = jnp.dtype(dtype).itemsize
    sublane = _sublane(itemsize)
    target_out_bytes, vmem_budget = _generation_params()

    tb = _choose_batch_tile(B, N1, N2, n_out, itemsize, sublane,
                            target_out_bytes, vmem_budget)
    grid = (pl.cdiv(B, tb),)

    footprint = _padded_footprint_bytes(tb, N1, N2, n_out, itemsize, sublane)
    vmem_limit = int(min(max(footprint + (4 << 20), 16 << 20),
                         vmem_budget + (8 << 20)))

    s1, s2 = _expansion_matrices(N1, N2, dtype)

    cost = pl.CostEstimate(
        flops=2 * B * (N1 + N2) * n_out,
        transcendentals=0,
        bytes_accessed=(B * (N1 + N2 + n_out) + (N1 + N2) * n_out) * itemsize,
    )

    return pl.pallas_call(
        _product_vector_kernel,
        out_shape=jax.ShapeDtypeStruct((B, n_out), dtype),
        grid=grid,
        in_specs=[
            pl.BlockSpec((tb, N1), lambda b: (b, 0)),
            pl.BlockSpec((tb, N2), lambda b: (b, 0)),
            pl.BlockSpec((N1, n_out), lambda b: (0, 0)),   # VMEM-resident constant
            pl.BlockSpec((N2, n_out), lambda b: (0, 0)),   # VMEM-resident constant
        ],
        out_specs=pl.BlockSpec((tb, n_out), lambda b: (b, 0)),
        compiler_params=pltpu.CompilerParams(
            dimension_semantics=("parallel",),
            vmem_limit_bytes=vmem_limit,
        ),
        cost_estimate=cost,
    )(dists1, dists2, s1, s2)


if __name__ == "__main__":
    key = jax.random.PRNGKey(0)
    k1, k2, k3, k4 = jax.random.split(key, 4)

    # Small shapes consistent with a RAT-SPN product node (module has no parameters).
    B, N1, N2 = 2, 8, 4
    dists1 = jax.random.normal(k1, (B, N1), dtype=jnp.float32)
    dists2 = jax.random.normal(k2, (B, N2), dtype=jnp.float32)

    out = jax.block_until_ready(product_vector_forward(dists1, dists2))
    ref = (dists1[:, None, :] + dists2[:, :, None]).reshape(B, N1 * N2)
    assert out.shape == (B, N1 * N2)
    assert jnp.allclose(out, ref, atol=1e-5, rtol=1e-5), \
        float(jnp.max(jnp.abs(out - ref)))

    # Second check: multi-block batch grid, non-128-aligned flattened width.
    B2_, N1_, N2_ = 16, 12, 20
    d1b = jax.random.normal(k3, (B2_, N1_), dtype=jnp.float32)
    d2b = jax.random.normal(k4, (B2_, N2_), dtype=jnp.float32)
    out_b = jax.block_until_ready(product_vector_forward(d1b, d2b))
    ref_b = (d1b[:, None, :] + d2b[:, :, None]).reshape(B2_, N1_ * N2_)
    assert jnp.allclose(out_b, ref_b, atol=1e-5, rtol=1e-5), \
        float(jnp.max(jnp.abs(out_b - ref_b)))

    print("KERNEL_OK")
</pallas_src>

<mosaic_0001>
module attributes {stable_mosaic.version = 11 : i64} {
  func.func @_product_vector_kernel(%arg0: i32, %arg1: memref<2x8xf32, #tpu.memory_space<vmem>>, %arg2: memref<2x4xf32, #tpu.memory_space<vmem>>, %arg3: memref<8x32xf32, #tpu.memory_space<vmem>>, %arg4: memref<4x32xf32, #tpu.memory_space<vmem>>, %arg5: memref<2x32xf32, #tpu.memory_space<vmem>>) attributes {dimension_semantics = [#tpu.dimension_semantics<parallel>], iteration_bounds = array<i64: 1>, scalar_prefetch = 0 : i64, scratch_operands = 0 : i64, tpu.core_type = #tpu.core_type<tc>, window_params = [{transform_indices = @transform_0, window_bounds = array<i64: 2, 8>}, {transform_indices = @transform_1, window_bounds = array<i64: 2, 4>}, {pipeline_mode = #tpu.pipeline_mode<synchronous>, transform_indices = @transform_2, window_bounds = array<i64: 8, 32>}, {pipeline_mode = #tpu.pipeline_mode<synchronous>, transform_indices = @transform_3, window_bounds = array<i64: 4, 32>}, {transform_indices = @transform_4, window_bounds = array<i64: 2, 32>}]} {
    %c0 = arith.constant 0 : index
    %c0_0 = arith.constant 0 : index
    %0 = vector.load %arg1[%c0, %c0_0] : memref<2x8xf32, #tpu.memory_space<vmem>>, vector<2x8xf32>
    %c0_1 = arith.constant 0 : index
    %c0_2 = arith.constant 0 : index
    %1 = vector.load %arg3[%c0_1, %c0_2] : memref<8x32xf32, #tpu.memory_space<vmem>>, vector<8x32xf32>
    %cst = arith.constant dense<0.000000e+00> : vector<2x32xf32>
    %2 = tpu.matmul %0, %1, %cst {dimension_numbers = #tpu.dot_dimension_numbers<[1], [0], [0], [1], [0, 0, 1, 1], [], []>, precision = #tpu.contract_precision<fp32>} : vector<2x8xf32>, vector<8x32xf32>, vector<2x32xf32> -> vector<2x32xf32>
    %c0_3 = arith.constant 0 : index
    %c0_4 = arith.constant 0 : index
    %3 = vector.load %arg2[%c0_3, %c0_4] : memref<2x4xf32, #tpu.memory_space<vmem>>, vector<2x4xf32>
    %c0_5 = arith.constant 0 : index
    %c0_6 = arith.constant 0 : index
    %4 = vector.load %arg4[%c0_5, %c0_6] : memref<4x32xf32, #tpu.memory_space<vmem>>, vector<4x32xf32>
    %cst_7 = arith.constant dense<0.000000e+00> : vector<2x32xf32>
    %5 = tpu.matmul %3, %4, %cst_7 {dimension_numbers = #tpu.dot_dimension_numbers<[1], [0], [0], [1], [0, 0, 1, 1], [], []>, precision = #tpu.contract_precision<fp32>} : vector<2x4xf32>, vector<4x32xf32>, vector<2x32xf32> -> vector<2x32xf32>
    %6 = arith.addf %2, %5 : vector<2x32xf32>
    %c0_8 = arith.constant 0 : index
    %c0_9 = arith.constant 0 : index
    %7 = vector.load %arg5[%c0_8, %c0_9] : memref<2x32xf32, #tpu.memory_space<vmem>>, vector<2x32xf32>
    tpu.vector_store %arg5[%c0_8, %c0_9], %6 {strides = array<i32>} : memref<2x32xf32, #tpu.memory_space<vmem>>, vector<2x32xf32>,
    return
  }
  func.func @transform_0(%arg0: i32) -> (i32, i32) {
    %c0_i32 = arith.constant 0 : i32
    %c0_i32_0 = arith.constant 0 : i32
    return %arg0, %c0_i32 : i32, i32
  }
  func.func @transform_1(%arg0: i32) -> (i32, i32) {
    %c0_i32 = arith.constant 0 : i32
    %c0_i32_0 = arith.constant 0 : i32
    return %arg0, %c0_i32 : i32, i32
  }
  func.func @transform_2(%arg0: i32) -> (i32, i32) {
    %c0_i32 = arith.constant 0 : i32
    %c0_i32_0 = arith.constant 0 : i32
    %c0_i32_1 = arith.constant 0 : i32
    return %c0_i32, %c0_i32_0 : i32, i32
  }
  func.func @transform_3(%arg0: i32) -> (i32, i32) {
    %c0_i32 = arith.constant 0 : i32
    %c0_i32_0 = arith.constant 0 : i32
    %c0_i32_1 = arith.constant 0 : i32
    return %c0_i32, %c0_i32_0 : i32, i32
  }
  func.func @transform_4(%arg0: i32) -> (i32, i32) {
    %c0_i32 = arith.constant 0 : i32
    %c0_i32_0 = arith.constant 0 : i32
    return %arg0, %c0_i32 : i32, i32
  }
}

</mosaic_0001>

<llo_original>
// kernel: tpu_custom_call.1
$region0: #{tpu_custom_call.1}
  #allocation0 [shape = 'u32[]', space=smem, size = 0x4, offset = 0x4, fixed_abs, tag = 'smem constant byte address 0x4 - core index']
  #allocation1 [shape = 'u32[144,128]{1,0:T(1,128)}', space=vmem, size = 0x12000, scoped, tag = 'internal scratch']
  %s0 = inlined_call_operand.hbm [shape: f32[2,8], index: 0, kind: input, shape index: {}]
  %s1 = inlined_call_operand.vmem [shape: f32[2,4], index: 1, kind: input, shape index: {}]
  %s2 = inlined_call_operand.hbm [shape: f32[8,32], index: 2, kind: input, shape index: {}]
  %s3 = inlined_call_operand.vmem [shape: f32[4,32], index: 3, kind: input, shape index: {}]
  %s4 = inlined_call_operand.hbm [shape: f32[2,32], index: 4, kind: output, shape index: {}]
  %s5 = sld [smem:[#allocation0]]
  $region34: #{tpu_custom_call.1} parent=0
    _
  %s7 = ssub.s32 1, %s5
  %s8 = scalar_select 0, %s7, %s5
  $region1: #{tpu_custom_call.1} parent=0
    #allocation2 [shape = 'u8[1024]{0}', space=vmem, size = 0x400, scoped, tag = 'input window, operand 0, single buffered']
    #allocation3 [shape = 's32[1]{0}', space=sflag, size = 0x4, scoped, tag = 'scoped memory for tpu_custom_call.1']
    #allocation4 [shape = 's32[1]{0}', space=sflag, size = 0x4, scoped, tag = 'scoped memory for tpu_custom_call.1']
    #allocation5 [shape = 'u8[4096]{0}', space=vmem, size = 0x1000, scoped, tag = 'input window, operand 2, single buffered']
    #allocation6 [shape = 's32[1]{0}', space=sflag, size = 0x4, scoped, tag = 'scoped memory for tpu_custom_call.1']
    #allocation7 [shape = 'u8[1024]{0}', space=vmem, size = 0x400, scoped, tag = 'output window, operand 0, single buffered']
    %9 = vsyncpa [#allocation3], 0
    %10 = vsyncpa [#allocation6], 0
    %11 = vsyncpa [#allocation4], 0
    // Predicated region
    $region2: #{tpu_custom_call.1} parent=1 // pred_check
      _
    $region3: #{tpu_custom_call.1} parent=1 // pred_check_branch
      %13 = sbr.rel (0) target = $region5
    $region4: #{tpu_custom_call.1} parent=1 // pred_region
      %s15 = ssub.s32 32, 32
      %16 = vsyncadd [#allocation3], %s15
      %s18 = sshll.u32 [#allocation2], 4
      %s19 = int_to_ptr.vmem [resolvable:$true] %s18
      %21 = dma.hbm_to_vmem [thread:$0]  %s0, 32, %s19, [#allocation3]
    $region5: #{tpu_custom_call.1} parent=1 // pred_fallthru
      _
    // Predicated region
    $region6: #{tpu_custom_call.1} parent=1 // pred_check
      _
    $region7: #{tpu_custom_call.1} parent=1 // pred_check_branch
      %23 = sbr.rel (0) target = $region9
    $region8: #{tpu_custom_call.1} parent=1 // pred_region
      _
    $region9: #{tpu_custom_call.1} parent=1 // pred_fallthru
      _
    // Predicated region
    $region10: #{tpu_custom_call.1} parent=1 // pred_check
      _
    $region11: #{tpu_custom_call.1} parent=1 // pred_check_branch
      %25 = sbr.rel (0) target = $region13
    $region12: #{tpu_custom_call.1} parent=1 // pred_region
      %s27 = ssub.s32 128, 128
      %28 = vsyncadd [#allocation6], %s27
      %s30 = sshll.u32 [#allocation5], 4
      %s31 = int_to_ptr.vmem [resolvable:$true] %s30
      %33 = dma.hbm_to_vmem [thread:$0]  %s2, 128, %s31, [#allocation6]
    $region13: #{tpu_custom_call.1} parent=1 // pred_fallthru
      _
    // Predicated region
    $region14: #{tpu_custom_call.1} parent=1 // pred_check
      _
    $region15: #{tpu_custom_call.1} parent=1 // pred_check_branch
      %35 = sbr.rel (0) target = $region17
    $region16: #{tpu_custom_call.1} parent=1 // pred_region
      _
    $region17: #{tpu_custom_call.1} parent=1 // pred_fallthru
      _
    // Predicated region
    $region18: #{tpu_custom_call.1} parent=1 // pred_check
      _
    $region19: #{tpu_custom_call.1} parent=1 // pred_check_branch
      %37 = sbr.rel (0) target = $region21
    $region20: #{tpu_custom_call.1} parent=1 // pred_region
      %38 = dma.done [#allocation3], 32
    $region21: #{tpu_custom_call.1} parent=1 // pred_fallthru
      _
    // Predicated region
    $region22: #{tpu_custom_call.1} parent=1 // pred_check
      _
    $region23: #{tpu_custom_call.1} parent=1 // pred_check_branch
      %40 = sbr.rel (0) target = $region25
    $region24: #{tpu_custom_call.1} parent=1 // pred_region
      %41 = dma.done [#allocation6], 128
    $region25: #{tpu_custom_call.1} parent=1 // pred_fallthru
      _
    %v42 = vld [vmem:[#allocation2] sm:$0x3]
    %v43 = vld [vmem:[#allocation5] sm:$0xff]
    %v44 = vld [vmem:[%s1] sm:$0x3]
    %v45 = vld [vmem:[%s3] sm:$0xf]
    %vm46 = vcmask 31744
    %v48 = vsel %vm46, %v44, 0
    %vm50 = vcmask 1043456
    %v52 = vsel %vm50, %v45, 0
    %54 = vmatprep.subr.mxu0 0.0
    %v55 = vand.u32 %v52, 4294901760
    %56 = vmatpush1.msra.mxu0 %v55
    %57 = vmatprep.subr.mxu0 0.0
    %58 = vmatpush1.msra.mxu0 0.0
    %59 = vmatprep.subr.mxu0 0.0
    %60 = vmatpush1.msra.mxu0 0.0
    %61 = vmatprep.subr.mxu0 0.0
    %62 = vmatpush1.msra.mxu0 0.0
    %63 = vmatprep.subr.mxu0 0.0
    %64 = vmatpush1.msra.mxu0 0.0
    %65 = vmatprep.subr.mxu0 0.0
    %66 = vmatpush1.msra.mxu0 0.0
    %67 = vmatprep.subr.mxu0 0.0
    %68 = vmatpush1.msra.mxu0 0.0
    %69 = vmatprep.subr.mxu0 0.0
    %70 = vmatpush1.msra.mxu0 0.0
    %71 = vmatprep.subr.mxu0 0.0
    %72 = vmatpush1.msra.mxu0 0.0
    %73 = vmatprep.subr.mxu0 0.0
    %74 = vmatpush1.msra.mxu0 0.0
    %75 = vmatprep.subr.mxu0 0.0
    %76 = vmatpush1.msra.mxu0 0.0
    %77 = vmatprep.subr.mxu0 0.0
    %78 = vmatpush1.msra.mxu0 0.0
    %79 = vmatprep.subr.mxu0 0.0
    %80 = vmatpush1.msra.mxu0 0.0
    %81 = vmatprep.subr.mxu0 0.0
    %82 = vmatpush1.msra.mxu0 0.0
    %83 = vmatprep.subr.mxu0 0.0
    %84 = vmatpush1.msra.mxu0 0.0
    %85 = vmatprep.subr.mxu0 0.0
    %86 = vmatpush1.msra.mxu0 0.0
    %87 = vmatprep.subr.mxu0 0.0
    %88 = vmatpush1.msra.mxu0 0.0
    %89 = vmatprep.subr.mxu0 0.0
    %90 = vmatpush1.msra.mxu0 0.0
    %91 = vmatprep.subr.mxu0 0.0
    %92 = vmatpush1.msra.mxu0 0.0
    %93 = vmatprep.subr.mxu0 0.0
    %94 = vmatpush1.msra.mxu0 0.0
    %95 = vmatprep.subr.mxu0 0.0
    %96 = vmatpush1.msra.mxu0 0.0
    %97 = vmatprep.subr.mxu0 0.0
    %98 = vmatpush1.msra.mxu0 0.0
    %99 = vmatprep.subr.mxu0 0.0
    %100 = vmatpush1.msra.mxu0 0.0
    %101 = vmatprep.subr.mxu0 0.0
    %102 = vmatpush1.msra.mxu0 0.0
    %103 = vmatprep.subr.mxu0 0.0
    %104 = vmatpush1.msra.mxu0 0.0
    %105 = vmatprep.subr.mxu0 0.0
    %106 = vmatpush1.msra.mxu0 0.0
    %107 = vmatprep.subr.mxu0 0.0
    %108 = vmatpush1.msra.mxu0 0.0
    %109 = vmatprep.subr.mxu0 0.0
    %110 = vmatpush1.msra.mxu0 0.0
    %111 = vmatprep.subr.mxu0 0.0
    %112 = vmatpush1.msra.mxu0 0.0
    %113 = vmatprep.subr.mxu0 0.0
    %114 = vmatpush1.msra.mxu0 0.0
    %115 = vmatprep.subr.mxu0 0.0
    %116 = vmatpush1.msra.mxu0 0.0
    %117 = vmatprep.subr.mxu0 0.0
    %118 = vmatpush1.msra.mxu0 0.0
    %119 = vmatprep.mubr.f32.mxu0 0.0
    %v120 = vand.u32 %v48, 4294901760
    %v121 = vsub.f32 %v48, %v120
    %v122 = vand.u32 %v121, 4294901760
    %v123 = vsub.f32 %v121, %v122
    %v124 = vand.u32 %v123, 4294901760
    %125 = vmatmul.mubr.f32.gmra.mrb[0].mxu0 %v124
    %v126 = vpop.f32.mrb[0].mxu0
    %v127 = vadd.f32 0.0, %v126
    %v128 = vpop.f32.mrb[0].mxu0
    %129 = vdwg.mxu0
    %130 = vmatprep.subr.mxu0 0.0
    %v131 = vand.u32 %v52, 4294901760
    %v132 = vsub.f32 %v52, %v131
    %v133 = vand.u32 %v132, 4294901760
    %v134 = vsub.f32 %v132, %v133
    %v135 = vand.u32 %v134, 4294901760
    %136 = vmatpush1.msra.mxu0 %v135
    %137 = vmatprep.subr.mxu0 0.0
    %138 = vmatpush1.msra.mxu0 0.0
    %139 = vmatprep.subr.mxu0 0.0
    %140 = vmatpush1.msra.mxu0 0.0
    %141 = vmatprep.subr.mxu0 0.0
    %142 = vmatpush1.msra.mxu0 0.0
    %143 = vmatprep.subr.mxu0 0.0
    %144 = vmatpush1.msra.mxu0 0.0
    %145 = vmatprep.subr.mxu0 0.0
    %146 = vmatpush1.msra.mxu0 0.0
    %147 = vmatprep.subr.mxu0 0.0
    %148 = vmatpush1.msra.mxu0 0.0
    %149 = vmatprep.subr.mxu0 0.0
    %150 = vmatpush1.msra.mxu0 0.0
    %151 = vmatprep.subr.mxu0 0.0
    %152 = vmatpush1.msra.mxu0 0.0
    %153 = vmatprep.subr.mxu0 0.0
    %154 = vmatpush1.msra.mxu0 0.0
    %155 = vmatprep.subr.mxu0 0.0
    %156 = vmatpush1.msra.mxu0 0.0
    %157 = vmatprep.subr.mxu0 0.0
    %158 = vmatpush1.msra.mxu0 0.0
    %159 = vmatprep.subr.mxu0 0.0
    %160 = vmatpush1.msra.mxu0 0.0
    %161 = vmatprep.subr.mxu0 0.0
    %162 = vmatpush1.msra.mxu0 0.0
    %163 = vmatprep.subr.mxu0 0.0
    %164 = vmatpush1.msra.mxu0 0.0
    %165 = vmatprep.subr.mxu0 0.0
    %166 = vmatpush1.msra.mxu0 0.0
    %167 = vmatprep.subr.mxu0 0.0
    %168 = vmatpush1.msra.mxu0 0.0
    %169 = vmatprep.subr.mxu0 0.0
    %170 = vmatpush1.msra.mxu0 0.0
    %171 = vmatprep.subr.mxu0 0.0
    %172 = vmatpush1.msra.mxu0 0.0
    %173 = vmatprep.subr.mxu0 0.0
    %174 = vmatpush1.msra.mxu0 0.0
    %175 = vmatprep.subr.mxu0 0.0
    %176 = vmatpush1.msra.mxu0 0.0
    %177 = vmatprep.subr.mxu0 0.0
    %178 = vmatpush1.msra.mxu0 0.0
    %179 = vmatprep.subr.mxu0 0.0
    %180 = vmatpush1.msra.mxu0 0.0
    %181 = vmatprep.subr.mxu0 0.0
    %182 = vmatpush1.msra.mxu0 0.0
    %183 = vmatprep.subr.mxu0 0.0
    %184 = vmatpush1.msra.mxu0 0.0
    %185 = vmatprep.subr.mxu0 0.0
    %186 = vmatpush1.msra.mxu0 0.0
    %187 = vmatprep.subr.mxu0 0.0
    %188 = vmatpush1.msra.mxu0 0.0
    %189 = vmatprep.subr.mxu0 0.0
    %190 = vmatpush1.msra.mxu0 0.0
    %191 = vmatprep.subr.mxu0 0.0
    %192 = vmatpush1.msra.mxu0 0.0
    %193 = vmatprep.subr.mxu0 0.0
    %194 = vmatpush1.msra.mxu0 0.0
    %195 = vmatprep.subr.mxu0 0.0
    %196 = vmatpush1.msra.mxu0 0.0
    %197 = vmatprep.subr.mxu0 0.0
    %198 = vmatpush1.msra.mxu0 0.0
    %199 = vmatprep.mubr.f32.mxu0 0.0
    %v200 = vand.u32 %v48, 4294901760
    %201 = vmatmul.mubr.f32.gmra.mrb[0].mxu0 %v200
    %v202 = vpop.f32.mrb[0].mxu0
    %v203 = vadd.f32 %v127, %v202
    %v204 = vpop.f32.mrb[0].mxu0
    %205 = vdwg.mxu0
    %206 = vmatprep.subr.mxu0 0.0
    %v207 = vand.u32 %v52, 4294901760
    %v208 = vsub.f32 %v52, %v207
    %209 = vmatpush1.msra.mxu0 %v208
    %210 = vmatprep.subr.mxu0 0.0
    %211 = vmatpush1.msra.mxu0 0.0
    %212 = vmatprep.subr.mxu0 0.0
    %213 = vmatpush1.msra.mxu0 0.0
    %214 = vmatprep.subr.mxu0 0.0
    %215 = vmatpush1.msra.mxu0 0.0
    %216 = vmatprep.subr.mxu0 0.0
    %217 = vmatpush1.msra.mxu0 0.0
    %218 = vmatprep.subr.mxu0 0.0
    %219 = vmatpush1.msra.mxu0 0.0
    %220 = vmatprep.subr.mxu0 0.0
    %221 = vmatpush1.msra.mxu0 0.0
    %222 = vmatprep.subr.mxu0 0.0
    %223 = vmatpush1.msra.mxu0 0.0
    %224 = vmatprep.subr.mxu0 0.0
    %225 = vmatpush1.msra.mxu0 0.0
    %226 = vmatprep.subr.mxu0 0.0
    %227 = vmatpush1.msra.mxu0 0.0
    %228 = vmatprep.subr.mxu0 0.0
    %229 = vmatpush1.msra.mxu0 0.0
    %230 = vmatprep.subr.mxu0 0.0
    %231 = vmatpush1.msra.mxu0 0.0
    %232 = vmatprep.subr.mxu0 0.0
    %233 = vmatpush1.msra.mxu0 0.0
    %234 = vmatprep.subr.mxu0 0.0
    %235 = vmatpush1.msra.mxu0 0.0
    %236 = vmatprep.subr.mxu0 0.0
    %237 = vmatpush1.msra.mxu0 0.0
    %238 = vmatprep.subr.mxu0 0.0
    %239 = vmatpush1.msra.mxu0 0.0
    %240 = vmatprep.subr.mxu0 0.0
    %241 = vmatpush1.msra.mxu0 0.0
    %242 = vmatprep.subr.mxu0 0.0
    %243 = vmatpush1.msra.mxu0 0.0
    %244 = vmatprep.subr.mxu0 0.0
    %245 = vmatpush1.msra.mxu0 0.0
    %246 = vmatprep.subr.mxu0 0.0
    %247 = vmatpush1.msra.mxu0 0.0
    %248 = vmatprep.subr.mxu0 0.0
    %249 = vmatpush1.msra.mxu0 0.0
    %250 = vmatprep.subr.mxu0 0.0
    %251 = vmatpush1.msra.mxu0 0.0
    %252 = vmatprep.subr.mxu0 0.0
    %253 = vmatpush1.msra.mxu0 0.0
    %254 = vmatprep.subr.mxu0 0.0
    %255 = vmatpush1.msra.mxu0 0.0
    %256 = vmatprep.subr.mxu0 0.0
    %257 = vmatpush1.msra.mxu0 0.0
    %258 = vmatprep.subr.mxu0 0.0
    %259 = vmatpush1.msra.mxu0 0.0
    %260 = vmatprep.subr.mxu0 0.0
    %261 = vmatpush1.msra.mxu0 0.0
    %262 = vmatprep.subr.mxu0 0.0
    %263 = vmatpush1.msra.mxu0 0.0
    %264 = vmatprep.subr.mxu0 0.0
    %265 = vmatpush1.msra.mxu0 0.0
    %266 = vmatprep.subr.mxu0 0.0
    %267 = vmatpush1.msra.mxu0 0.0
    %268 = vmatprep.subr.mxu0 0.0
    %269 = vmatpush1.msra.mxu0 0.0
    %270 = vmatprep.subr.mxu0 0.0
    %271 = vmatpush1.msra.mxu0 0.0
    %272 = vmatprep.mubr.f32.mxu0 0.0
    %v273 = vand.u32 %v48, 4294901760
    %v274 = vsub.f32 %v48, %v273
    %275 = vmatmul.mubr.f32.gmra.mrb[0].mxu0 %v274
    %v276 = vpop.f32.mrb[0].mxu0
    %v277 = vadd.f32 %v203, %v276
    %v278 = vpop.f32.mrb[0].mxu0
    %279 = vdwg.mxu0
    %280 = vmatprep.subr.mxu0 0.0
    %v281 = vand.u32 %v52, 4294901760
    %282 = vmatpush1.msra.mxu0 %v281
    %283 = vmatprep.subr.mxu0 0.0
    %284 = vmatpush1.msra.mxu0 0.0
    %285 = vmatprep.subr.mxu0 0.0
    %286 = vmatpush1.msra.mxu0 0.0
    %287 = vmatprep.subr.mxu0 0.0
    %288 = vmatpush1.msra.mxu0 0.0
    %289 = vmatprep.subr.mxu0 0.0
    %290 = vmatpush1.msra.mxu0 0.0
    %291 = vmatprep.subr.mxu0 0.0
    %292 = vmatpush1.msra.mxu0 0.0
    %293 = vmatprep.subr.mxu0 0.0
    %294 = vmatpush1.msra.mxu0 0.0
    %295 = vmatprep.subr.mxu0 0.0
    %296 = vmatpush1.msra.mxu0 0.0
    %297 = vmatprep.subr.mxu0 0.0
    %298 = vmatpush1.msra.mxu0 0.0
    %299 = vmatprep.subr.mxu0 0.0
    %300 = vmatpush1.msra.mxu0 0.0
    %301 = vmatprep.subr.mxu0 0.0
    %302 = vmatpush1.msra.mxu0 0.0
    %303 = vmatprep.subr.mxu0 0.0
    %304 = vmatpush1.msra.mxu0 0.0
    %305 = vmatprep.subr.mxu0 0.0
    %306 = vmatpush1.msra.mxu0 0.0
    %307 = vmatprep.subr.mxu0 0.0
    %308 = vmatpush1.msra.mxu0 0.0
    %309 = vmatprep.subr.mxu0 0.0
    %310 = vmatpush1.msra.mxu0 0.0
    %311 = vmatprep.subr.mxu0 0.0
    %312 = vmatpush1.msra.mxu0 0.0
    %313 = vmatprep.subr.mxu0 0.0
    %314 = vmatpush1.msra.mxu0 0.0
    %315 = vmatprep.subr.mxu0 0.0
    %316 = vmatpush1.msra.mxu0 0.0
    %317 = vmatprep.subr.mxu0 0.0
    %318 = vmatpush1.msra.mxu0 0.0
    %319 = vmatprep.subr.mxu0 0.0
    %320 = vmatpush1.msra.mxu0 0.0
    %321 = vmatprep.subr.mxu0 0.0
    %322 = vmatpush1.msra.mxu0 0.0
    %323 = vmatprep.subr.mxu0 0.0
    %324 = vmatpush1.msra.mxu0 0.0
    %325 = vmatprep.subr.mxu0 0.0
    %326 = vmatpush1.msra.mxu0 0.0
    %327 = vmatprep.subr.mxu0 0.0
    %328 = vmatpush1.msra.mxu0 0.0
    %329 = vmatprep.subr.mxu0 0.0
    %330 = vmatpush1.msra.mxu0 0.0
    %331 = vmatprep.subr.mxu0 0.0
    %332 = vmatpush1.msra.mxu0 0.0
    %333 = vmatprep.subr.mxu0 0.0
    %334 = vmatpush1.msra.mxu0 0.0
    %335 = vmatprep.subr.mxu0 0.0
    %336 = vmatpush1.msra.mxu0 0.0
    %337 = vmatprep.subr.mxu0 0.0
    %338 = vmatpush1.msra.mxu0 0.0
    %339 = vmatprep.subr.mxu0 0.0
    %340 = vmatpush1.msra.mxu0 0.0
    %341 = vmatprep.subr.mxu0 0.0
    %342 = vmatpush1.msra.mxu0 0.0
    %343 = vmatprep.subr.mxu0 0.0
    %344 = vmatpush1.msra.mxu0 0.0
    %345 = vmatprep.mubr.f32.mxu0 0.0
    %v346 = vand.u32 %v48, 4294901760
    %v347 = vsub.f32 %v48, %v346
    %v348 = vand.u32 %v347, 4294901760
    %349 = vmatmul.mubr.f32.gmra.mrb[0].mxu0 %v348
    %v350 = vpop.f32.mrb[0].mxu0
    %v351 = vadd.f32 %v277, %v350
    %v352 = vpop.f32.mrb[0].mxu0
    %353 = vdwg.mxu0
    %354 = vmatprep.subr.mxu0 0.0
    %v355 = vand.u32 %v52, 4294901760
    %v356 = vsub.f32 %v52, %v355
    %v357 = vand.u32 %v356, 4294901760
    %358 = vmatpush1.msra.mxu0 %v357
    %359 = vmatprep.subr.mxu0 0.0
    %360 = vmatpush1.msra.mxu0 0.0
    %361 = vmatprep.subr.mxu0 0.0
    %362 = vmatpush1.msra.mxu0 0.0
    %363 = vmatprep.subr.mxu0 0.0
    %364 = vmatpush1.msra.mxu0 0.0
    %365 = vmatprep.subr.mxu0 0.0
    %366 = vmatpush1.msra.mxu0 0.0
    %367 = vmatprep.subr.mxu0 0.0
    %368 = vmatpush1.msra.mxu0 0.0
    %369 = vmatprep.subr.mxu0 0.0
    %370 = vmatpush1.msra.mxu0 0.0
    %371 = vmatprep.subr.mxu0 0.0
    %372 = vmatpush1.msra.mxu0 0.0
    %373 = vmatprep.subr.mxu0 0.0
    %374 = vmatpush1.msra.mxu0 0.0
    %375 = vmatprep.subr.mxu0 0.0
    %376 = vmatpush1.msra.mxu0 0.0
    %377 = vmatprep.subr.mxu0 0.0
    %378 = vmatpush1.msra.mxu0 0.0
    %379 = vmatprep.subr.mxu0 0.0
    %380 = vmatpush1.msra.mxu0 0.0
    %381 = vmatprep.subr.mxu0 0.0
    %382 = vmatpush1.msra.mxu0 0.0
    %383 = vmatprep.subr.mxu0 0.0
    %384 = vmatpush1.msra.mxu0 0.0
    %385 = vmatprep.subr.mxu0 0.0
    %386 = vmatpush1.msra.mxu0 0.0
    %387 = vmatprep.subr.mxu0 0.0
    %388 = vmatpush1.msra.mxu0 0.0
    %389 = vmatprep.subr.mxu0 0.0
    %390 = vmatpush1.msra.mxu0 0.0
    %391 = vmatprep.subr.mxu0 0.0
    %392 = vmatpush1.msra.mxu0 0.0
    %393 = vmatprep.subr.mxu0 0.0
    %394 = vmatpush1.msra.mxu0 0.0
    %395 = vmatprep.subr.mxu0 0.0
    %396 = vmatpush1.msra.mxu0 0.0
    %397 = vmatprep.subr.mxu0 0.0
    %398 = vmatpush1.msra.mxu0 0.0
    %399 = vmatprep.subr.mxu0 0.0
    %400 = vmatpush1.msra.mxu0 0.0
    %401 = vmatprep.subr.mxu0 0.0
    %402 = vmatpush1.msra.mxu0 0.0
    %403 = vmatprep.subr.mxu0 0.0
    %404 = vmatpush1.msra.mxu0 0.0
    %405 = vmatprep.subr.mxu0 0.0
    %406 = vmatpush1.msra.mxu0 0.0
    %407 = vmatprep.subr.mxu0 0.0
    %408 = vmatpush1.msra.mxu0 0.0
    %409 = vmatprep.subr.mxu0 0.0
    %410 = vmatpush1.msra.mxu0 0.0
    %411 = vmatprep.subr.mxu0 0.0
    %412 = vmatpush1.msra.mxu0 0.0
    %413 = vmatprep.subr.mxu0 0.0
    %414 = vmatpush1.msra.mxu0 0.0
    %415 = vmatprep.subr.mxu0 0.0
    %416 = vmatpush1.msra.mxu0 0.0
    %417 = vmatprep.subr.mxu0 0.0
    %418 = vmatpush1.msra.mxu0 0.0
    %419 = vmatprep.subr.mxu0 0.0
    %420 = vmatpush1.msra.mxu0 0.0
    %421 = vmatprep.mubr.f32.mxu0 0.0
    %v422 = vand.u32 %v48, 4294901760
    %423 = vmatmul.mubr.f32.gmra.mrb[0].mxu0 %v422
    %v424 = vpop.f32.mrb[0].mxu0
    %v425 = vadd.f32 %v351, %v424
    %v426 = vpop.f32.mrb[0].mxu0
    %427 = vdwg.mxu0
    %428 = vmatprep.subr.mxu0 0.0
    %v429 = vand.u32 %v52, 4294901760
    %430 = vmatpush1.msra.mxu0 %v429
    %431 = vmatprep.subr.mxu0 0.0
    %432 = vmatpush1.msra.mxu0 0.0
    %433 = vmatprep.subr.mxu0 0.0
    %434 = vmatpush1.msra.mxu0 0.0
    %435 = vmatprep.subr.mxu0 0.0
    %436 = vmatpush1.msra.mxu0 0.0
    %437 = vmatprep.subr.mxu0 0.0
    %438 = vmatpush1.msra.mxu0 0.0
    %439 = vmatprep.subr.mxu0 0.0
    %440 = vmatpush1.msra.mxu0 0.0
    %441 = vmatprep.subr.mxu0 0.0
    %442 = vmatpush1.msra.mxu0 0.0
    %443 = vmatprep.subr.mxu0 0.0
    %444 = vmatpush1.msra.mxu0 0.0
    %445 = vmatprep.subr.mxu0 0.0
    %446 = vmatpush1.msra.mxu0 0.0
    %447 = vmatprep.subr.mxu0 0.0
    %448 = vmatpush1.msra.mxu0 0.0
    %449 = vmatprep.subr.mxu0 0.0
    %450 = vmatpush1.msra.mxu0 0.0
    %451 = vmatprep.subr.mxu0 0.0
    %452 = vmatpush1.msra.mxu0 0.0
    %453 = vmatprep.subr.mxu0 0.0
    %454 = vmatpush1.msra.mxu0 0.0
    %455 = vmatprep.subr.mxu0 0.0
    %456 = vmatpush1.msra.mxu0 0.0
    %457 = vmatprep.subr.mxu0 0.0
    %458 = vmatpush1.msra.mxu0 0.0
    %459 = vmatprep.subr.mxu0 0.0
    %460 = vmatpush1.msra.mxu0 0.0
    %461 = vmatprep.subr.mxu0 0.0
    %462 = vmatpush1.msra.mxu0 0.0
    %463 = vmatprep.subr.mxu0 0.0
    %464 = vmatpush1.msra.mxu0 0.0
    %465 = vmatprep.subr.mxu0 0.0
    %466 = vmatpush1.msra.mxu0 0.0
    %467 = vmatprep.subr.mxu0 0.0
    %468 = vmatpush1.msra.mxu0 0.0
    %469 = vmatprep.subr.mxu0 0.0
    %470 = vmatpush1.msra.mxu0 0.0
    %471 = vmatprep.subr.mxu0 0.0
    %472 = vmatpush1.msra.mxu0 0.0
    %473 = vmatprep.subr.mxu0 0.0
    %474 = vmatpush1.msra.mxu0 0.0
    %475 = vmatprep.subr.mxu0 0.0
    %476 = vmatpush1.msra.mxu0 0.0
    %477 = vmatprep.subr.mxu0 0.0
    %478 = vmatpush1.msra.mxu0 0.0
    %479 = vmatprep.subr.mxu0 0.0
    %480 = vmatpush1.msra.mxu0 0.0
    %481 = vmatprep.subr.mxu0 0.0
    %482 = vmatpush1.msra.mxu0 0.0
    %483 = vmatprep.subr.mxu0 0.0
    %484 = vmatpush1.msra.mxu0 0.0
    %485 = vmatprep.subr.mxu0 0.0
    %486 = vmatpush1.msra.mxu0 0.0
    %487 = vmatprep.subr.mxu0 0.0
    %488 = vmatpush1.msra.mxu0 0.0
    %489 = vmatprep.subr.mxu0 0.0
    %490 = vmatpush1.msra.mxu0 0.0
    %491 = vmatprep.subr.mxu0 0.0
    %492 = vmatpush1.msra.mxu0 0.0
    %493 = vmatprep.mubr.f32.mxu0 0.0
    %v494 = vand.u32 %v48, 4294901760
    %495 = vmatmul.mubr.f32.gmra.mrb[0].mxu0 %v494
    %v496 = vpop.f32.mrb[0].mxu0
    %v497 = vadd.f32 %v425, %v496
    %v498 = vpop.f32.mrb[0].mxu0
    %499 = vdwg.mxu0
    %vm500 = vcmask 64512
    %v502 = vsel %vm500, %v42, 0
    %504 = vmatprep.subr.mxu0 0.0
    %v505 = vand.u32 %v43, 4294901760
    %506 = vmatpush1.msra.mxu0 %v505
    %507 = vmatprep.subr.mxu0 0.0
    %508 = vmatpush1.msra.mxu0 0.0
    %509 = vmatprep.subr.mxu0 0.0
    %510 = vmatpush1.msra.mxu0 0.0
    %511 = vmatprep.subr.mxu0 0.0
    %512 = vmatpush1.msra.mxu0 0.0
    %513 = vmatprep.subr.mxu0 0.0
    %514 = vmatpush1.msra.mxu0 0.0
    %515 = vmatprep.subr.mxu0 0.0
    %516 = vmatpush1.msra.mxu0 0.0
    %517 = vmatprep.subr.mxu0 0.0
    %518 = vmatpush1.msra.mxu0 0.0
    %519 = vmatprep.subr.mxu0 0.0
    %520 = vmatpush1.msra.mxu0 0.0
    %521 = vmatprep.subr.mxu0 0.0
    %522 = vmatpush1.msra.mxu0 0.0
    %523 = vmatprep.subr.mxu0 0.0
    %524 = vmatpush1.msra.mxu0 0.0
    %525 = vmatprep.subr.mxu0 0.0
    %526 = vmatpush1.msra.mxu0 0.0
    %527 = vmatprep.subr.mxu0 0.0
    %528 = vmatpush1.msra.mxu0 0.0
    %529 = vmatprep.subr.mxu0 0.0
    %530 = vmatpush1.msra.mxu0 0.0
    %531 = vmatprep.subr.mxu0 0.0
    %532 = vmatpush1.msra.mxu0 0.0
    %533 = vmatprep.subr.mxu0 0.0
    %534 = vmatpush1.msra.mxu0 0.0
    %535 = vmatprep.subr.mxu0 0.0
    %536 = vmatpush1.msra.mxu0 0.0
    %537 = vmatprep.subr.mxu0 0.0
    %538 = vmatpush1.msra.mxu0 0.0
    %539 = vmatprep.subr.mxu0 0.0
    %540 = vmatpush1.msra.mxu0 0.0
    %541 = vmatprep.subr.mxu0 0.0
    %542 = vmatpush1.msra.mxu0 0.0
    %543 = vmatprep.subr.mxu0 0.0
    %544 = vmatpush1.msra.mxu0 0.0
    %545 = vmatprep.subr.mxu0 0.0
    %546 = vmatpush1.msra.mxu0 0.0
    %547 = vmatprep.subr.mxu0 0.0
    %548 = vmatpush1.msra.mxu0 0.0
    %549 = vmatprep.subr.mxu0 0.0
    %550 = vmatpush1.msra.mxu0 0.0
    %551 = vmatprep.subr.mxu0 0.0
    %552 = vmatpush1.msra.mxu0 0.0
    %553 = vmatprep.subr.mxu0 0.0
    %554 = vmatpush1.msra.mxu0 0.0
    %555 = vmatprep.subr.mxu0 0.0
    %556 = vmatpush1.msra.mxu0 0.0
    %557 = vmatprep.subr.mxu0 0.0
    %558 = vmatpush1.msra.mxu0 0.0
    %559 = vmatprep.subr.mxu0 0.0
    %560 = vmatpush1.msra.mxu0 0.0
    %561 = vmatprep.subr.mxu0 0.0
    %562 = vmatpush1.msra.mxu0 0.0
    %563 = vmatprep.subr.mxu0 0.0
    %564 = vmatpush1.msra.mxu0 0.0
    %565 = vmatprep.subr.mxu0 0.0
    %566 = vmatpush1.msra.mxu0 0.0
    %567 = vmatprep.subr.mxu0 0.0
    %568 = vmatpush1.msra.mxu0 0.0
    %569 = vmatprep.mubr.f32.mxu0 0.0
    %v570 = vand.u32 %v502, 4294901760
    %v571 = vsub.f32 %v502, %v570
    %v572 = vand.u32 %v571, 4294901760
    %v573 = vsub.f32 %v571, %v572
    %v574 = vand.u32 %v573, 4294901760
    %575 = vmatmul.mubr.f32.gmra.mrb[0].mxu0 %v574
    %v576 = vpop.f32.mrb[0].mxu0
    %v577 = vadd.f32 %v497, %v576
    %v578 = vpop.f32.mrb[0].mxu0
    %579 = vdwg.mxu0
    %580 = vmatprep.subr.mxu0 0.0
    %v581 = vand.u32 %v43, 4294901760
    %v582 = vsub.f32 %v43, %v581
    %v583 = vand.u32 %v582, 4294901760
    %v584 = vsub.f32 %v582, %v583
    %v585 = vand.u32 %v584, 4294901760
    %586 = vmatpush1.msra.mxu0 %v585
    %587 = vmatprep.subr.mxu0 0.0
    %588 = vmatpush1.msra.mxu0 0.0
    %589 = vmatprep.subr.mxu0 0.0
    %590 = vmatpush1.msra.mxu0 0.0
    %591 = vmatprep.subr.mxu0 0.0
    %592 = vmatpush1.msra.mxu0 0.0
    %593 = vmatprep.subr.mxu0 0.0
    %594 = vmatpush1.msra.mxu0 0.0
    %595 = vmatprep.subr.mxu0 0.0
    %596 = vmatpush1.msra.mxu0 0.0
    %597 = vmatprep.subr.mxu0 0.0
    %598 = vmatpush1.msra.mxu0 0.0
    %599 = vmatprep.subr.mxu0 0.0
    %600 = vmatpush1.msra.mxu0 0.0
    %601 = vmatprep.subr.mxu0 0.0
    %602 = vmatpush1.msra.mxu0 0.0
    %603 = vmatprep.subr.mxu0 0.0
    %604 = vmatpush1.msra.mxu0 0.0
    %605 = vmatprep.subr.mxu0 0.0
    %606 = vmatpush1.msra.mxu0 0.0
    %607 = vmatprep.subr.mxu0 0.0
    %608 = vmatpush1.msra.mxu0 0.0
    %609 = vmatprep.subr.mxu0 0.0
    %610 = vmatpush1.msra.mxu0 0.0
    %611 = vmatprep.subr.mxu0 0.0
    %612 = vmatpush1.msra.mxu0 0.0
    %613 = vmatprep.subr.mxu0 0.0
    %614 = vmatpush1.msra.mxu0 0.0
    %615 = vmatprep.subr.mxu0 0.0
    %616 = vmatpush1.msra.mxu0 0.0
    %617 = vmatprep.subr.mxu0 0.0
    %618 = vmatpush1.msra.mxu0 0.0
    %619 = vmatprep.subr.mxu0 0.0
    %620 = vmatpush1.msra.mxu0 0.0
    %621 = vmatprep.subr.mxu0 0.0
    %622 = vmatpush1.msra.mxu0 0.0
    %623 = vmatprep.subr.mxu0 0.0
    %624 = vmatpush1.msra.mxu0 0.0
    %625 = vmatprep.subr.mxu0 0.0
    %626 = vmatpush1.msra.mxu0 0.0
    %627 = vmatprep.subr.mxu0 0.0
    %628 = vmatpush1.msra.mxu0 0.0
    %629 = vmatprep.subr.mxu0 0.0
    %630 = vmatpush1.msra.mxu0 0.0
    %631 = vmatprep.subr.mxu0 0.0
    %632 = vmatpush1.msra.mxu0 0.0
    %633 = vmatprep.subr.mxu0 0.0
    %634 = vmatpush1.msra.mxu0 0.0
    %635 = vmatprep.subr.mxu0 0.0
    %636 = vmatpush1.msra.mxu0 0.0
    %637 = vmatprep.subr.mxu0 0.0
    %638 = vmatpush1.msra.mxu0 0.0
    %639 = vmatprep.subr.mxu0 0.0
    %640 = vmatpush1.msra.mxu0 0.0
    %641 = vmatprep.subr.mxu0 0.0
    %642 = vmatpush1.msra.mxu0 0.0
    %643 = vmatprep.subr.mxu0 0.0
    %644 = vmatpush1.msra.mxu0 0.0
    %645 = vmatprep.subr.mxu0 0.0
    %646 = vmatpush1.msra.mxu0 0.0
    %647 = vmatprep.subr.mxu0 0.0
    %648 = vmatpush1.msra.mxu0 0.0
    %649 = vmatprep.mubr.f32.mxu0 0.0
    %v650 = vand.u32 %v502, 4294901760
    %651 = vmatmul.mubr.f32.gmra.mrb[0].mxu0 %v650
    %v652 = vpop.f32.mrb[0].mxu0
    %v653 = vadd.f32 %v577, %v652
    %v654 = vpop.f32.mrb[0].mxu0
    %655 = vdwg.mxu0
    %656 = vmatprep.subr.mxu0 0.0
    %v657 = vand.u32 %v43, 4294901760
    %v658 = vsub.f32 %v43, %v657
    %659 = vmatpush1.msra.mxu0 %v658
    %660 = vmatprep.subr.mxu0 0.0
    %661 = vmatpush1.msra.mxu0 0.0
    %662 = vmatprep.subr.mxu0 0.0
    %663 = vmatpush1.msra.mxu0 0.0
    %664 = vmatprep.subr.mxu0 0.0
    %665 = vmatpush1.msra.mxu0 0.0
    %666 = vmatprep.subr.mxu0 0.0
    %667 = vmatpush1.msra.mxu0 0.0
    %668 = vmatprep.subr.mxu0 0.0
    %669 = vmatpush1.msra.mxu0 0.0
    %670 = vmatprep.subr.mxu0 0.0
    %671 = vmatpush1.msra.mxu0 0.0
    %672 = vmatprep.subr.mxu0 0.0
    %673 = vmatpush1.msra.mxu0 0.0
    %674 = vmatprep.subr.mxu0 0.0
    %675 = vmatpush1.msra.mxu0 0.0
    %676 = vmatprep.subr.mxu0 0.0
    %677 = vmatpush1.msra.mxu0 0.0
    %678 = vmatprep.subr.mxu0 0.0
    %679 = vmatpush1.msra.mxu0 0.0
    %680 = vmatprep.subr.mxu0 0.0
    %681 = vmatpush1.msra.mxu0 0.0
    %682 = vmatprep.subr.mxu0 0.0
    %683 = vmatpush1.msra.mxu0 0.0
    %684 = vmatprep.subr.mxu0 0.0
    %685 = vmatpush1.msra.mxu0 0.0
    %686 = vmatprep.subr.mxu0 0.0
    %687 = vmatpush1.msra.mxu0 0.0
    %688 = vmatprep.subr.mxu0 0.0
    %689 = vmatpush1.msra.mxu0 0.0
    %690 = vmatprep.subr.mxu0 0.0
    %691 = vmatpush1.msra.mxu0 0.0
    %692 = vmatprep.subr.mxu0 0.0
    %693 = vmatpush1.msra.mxu0 0.0
    %694 = vmatprep.subr.mxu0 0.0
    %695 = vmatpush1.msra.mxu0 0.0
    %696 = vmatprep.subr.mxu0 0.0
    %697 = vmatpush1.msra.mxu0 0.0
    %698 = vmatprep.subr.mxu0 0.0
    %699 = vmatpush1.msra.mxu0 0.0
    %700 = vmatprep.subr.mxu0 0.0
    %701 = vmatpush1.msra.mxu0 0.0
    %702 = vmatprep.subr.mxu0 0.0
    %703 = vmatpush1.msra.mxu0 0.0
    %704 = vmatprep.subr.mxu0 0.0
    %705 = vmatpush1.msra.mxu0 0.0
    %706 = vmatprep.subr.mxu0 0.0
    %707 = vmatpush1.msra.mxu0 0.0
    %708 = vmatprep.subr.mxu0 0.0
    %709 = vmatpush1.msra.mxu0 0.0
    %710 = vmatprep.subr.mxu0 0.0
    %711 = vmatpush1.msra.mxu0 0.0
    %712 = vmatprep.subr.mxu0 0.0
    %713 = vmatpush1.msra.mxu0 0.0
    %714 = vmatprep.subr.mxu0 0.0
    %715 = vmatpush1.msra.mxu0 0.0
    %716 = vmatprep.subr.mxu0 0.0
    %717 = vmatpush1.msra.mxu0 0.0
    %718 = vmatprep.subr.mxu0 0.0
    %719 = vmatpush1.msra.mxu0 0.0
    %720 = vmatprep.subr.mxu0 0.0
    %721 = vmatpush1.msra.mxu0 0.0
    %722 = vmatprep.mubr.f32.mxu0 0.0
    %v723 = vand.u32 %v502, 4294901760
    %v724 = vsub.f32 %v502, %v723
    %725 = vmatmul.mubr.f32.gmra.mrb[0].mxu0 %v724
    %v726 = vpop.f32.mrb[0].mxu0
    %v727 = vadd.f32 %v653, %v726
    %v728 = vpop.f32.mrb[0].mxu0
    %729 = vdwg.mxu0
    %730 = vmatprep.subr.mxu0 0.0
    %v731 = vand.u32 %v43, 4294901760
    %732 = vmatpush1.msra.mxu0 %v731
    %733 = vmatprep.subr.mxu0 0.0
    %734 = vmatpush1.msra.mxu0 0.0
    %735 = vmatprep.subr.mxu0 0.0
    %736 = vmatpush1.msra.mxu0 0.0
    %737 = vmatprep.subr.mxu0 0.0
    %738 = vmatpush1.msra.mxu0 0.0
    %739 = vmatprep.subr.mxu0 0.0
    %740 = vmatpush1.msra.mxu0 0.0
    %741 = vmatprep.subr.mxu0 0.0
    %742 = vmatpush1.msra.mxu0 0.0
    %743 = vmatprep.subr.mxu0 0.0
    %744 = vmatpush1.msra.mxu0 0.0
    %745 = vmatprep.subr.mxu0 0.0
    %746 = vmatpush1.msra.mxu0 0.0
    %747 = vmatprep.subr.mxu0 0.0
    %748 = vmatpush1.msra.mxu0 0.0
    %749 = vmatprep.subr.mxu0 0.0
    %750 = vmatpush1.msra.mxu0 0.0
    %751 = vmatprep.subr.mxu0 0.0
    %752 = vmatpush1.msra.mxu0 0.0
    %753 = vmatprep.subr.mxu0 0.0
    %754 = vmatpush1.msra.mxu0 0.0
    %755 = vmatprep.subr.mxu0 0.0
    %756 = vmatpush1.msra.mxu0 0.0
    %757 = vmatprep.subr.mxu0 0.0
    %758 = vmatpush1.msra.mxu0 0.0
    %759 = vmatprep.subr.mxu0 0.0
    %760 = vmatpush1.msra.mxu0 0.0
    %761 = vmatprep.subr.mxu0 0.0
    %762 = vmatpush1.msra.mxu0 0.0
    %763 = vmatprep.subr.mxu0 0.0
    %764 = vmatpush1.msra.mxu0 0.0
    %765 = vmatprep.subr.mxu0 0.0
    %766 = vmatpush1.msra.mxu0 0.0
    %767 = vmatprep.subr.mxu0 0.0
    %768 = vmatpush1.msra.mxu0 0.0
    %769 = vmatprep.subr.mxu0 0.0
    %770 = vmatpush1.msra.mxu0 0.0
    %771 = vmatprep.subr.mxu0 0.0
    %772 = vmatpush1.msra.mxu0 0.0
    %773 = vmatprep.subr.mxu0 0.0
    %774 = vmatpush1.msra.mxu0 0.0
    %775 = vmatprep.subr.mxu0 0.0
    %776 = vmatpush1.msra.mxu0 0.0
    %777 = vmatprep.subr.mxu0 0.0
    %778 = vmatpush1.msra.mxu0 0.0
    %779 = vmatprep.subr.mxu0 0.0
    %780 = vmatpush1.msra.mxu0 0.0
    %781 = vmatprep.subr.mxu0 0.0
    %782 = vmatpush1.msra.mxu0 0.0
    %783 = vmatprep.subr.mxu0 0.0
    %784 = vmatpush1.msra.mxu0 0.0
    %785 = vmatprep.subr.mxu0 0.0
    %786 = vmatpush1.msra.mxu0 0.0
    %787 = vmatprep.subr.mxu0 0.0
    %788 = vmatpush1.msra.mxu0 0.0
    %789 = vmatprep.subr.mxu0 0.0
    %790 = vmatpush1.msra.mxu0 0.0
    %791 = vmatprep.subr.mxu0 0.0
    %792 = vmatpush1.msra.mxu0 0.0
    %793 = vmatprep.subr.mxu0 0.0
    %794 = vmatpush1.msra.mxu0 0.0
    %795 = vmatprep.mubr.f32.mxu0 0.0
    %v796 = vand.u32 %v502, 4294901760
    %v797 = vsub.f32 %v502, %v796
    %v798 = vand.u32 %v797, 4294901760
    %799 = vmatmul.mubr.f32.gmra.mrb[0].mxu0 %v798
    %v800 = vpop.f32.mrb[0].mxu0
    %v801 = vadd.f32 %v727, %v800
    %v802 = vpop.f32.mrb[0].mxu0
    %803 = vdwg.mxu0
    %804 = vmatprep.subr.mxu0 0.0
    %v805 = vand.u32 %v43, 4294901760
    %v806 = vsub.f32 %v43, %v805
    %v807 = vand.u32 %v806, 4294901760
    %808 = vmatpush1.msra.mxu0 %v807
    %809 = vmatprep.subr.mxu0 0.0
    %810 = vmatpush1.msra.mxu0 0.0
    %811 = vmatprep.subr.mxu0 0.0
    %812 = vmatpush1.msra.mxu0 0.0
    %813 = vmatprep.subr.mxu0 0.0
    %814 = vmatpush1.msra.mxu0 0.0
    %815 = vmatprep.subr.mxu0 0.0
    %816 = vmatpush1.msra.mxu0 0.0
    %817 = vmatprep.subr.mxu0 0.0
    %818 = vmatpush1.msra.mxu0 0.0
    %819 = vmatprep.subr.mxu0 0.0
    %820 = vmatpush1.msra.mxu0 0.0
    %821 = vmatprep.subr.mxu0 0.0
    %822 = vmatpush1.msra.mxu0 0.0
    %823 = vmatprep.subr.mxu0 0.0
    %824 = vmatpush1.msra.mxu0 0.0
    %825 = vmatprep.subr.mxu0 0.0
    %826 = vmatpush1.msra.mxu0 0.0
    %827 = vmatprep.subr.mxu0 0.0
    %828 = vmatpush1.msra.mxu0 0.0
    %829 = vmatprep.subr.mxu0 0.0
    %830 = vmatpush1.msra.mxu0 0.0
    %831 = vmatprep.subr.mxu0 0.0
    %832 = vmatpush1.msra.mxu0 0.0
    %833 = vmatprep.subr.mxu0 0.0
    %834 = vmatpush1.msra.mxu0 0.0
    %835 = vmatprep.subr.mxu0 0.0
    %836 = vmatpush1.msra.mxu0 0.0
    %837 = vmatprep.subr.mxu0 0.0
    %838 = vmatpush1.msra.mxu0 0.0
    %839 = vmatprep.subr.mxu0 0.0
    %840 = vmatpush1.msra.mxu0 0.0
    %841 = vmatprep.subr.mxu0 0.0
    %842 = vmatpush1.msra.mxu0 0.0
    %843 = vmatprep.subr.mxu0 0.0
    %844 = vmatpush1.msra.mxu0 0.0
    %845 = vmatprep.subr.mxu0 0.0
    %846 = vmatpush1.msra.mxu0 0.0
    %847 = vmatprep.subr.mxu0 0.0
    %848 = vmatpush1.msra.mxu0 0.0
    %849 = vmatprep.subr.mxu0 0.0
    %850 = vmatpush1.msra.mxu0 0.0
    %851 = vmatprep.subr.mxu0 0.0
    %852 = vmatpush1.msra.mxu0 0.0
    %853 = vmatprep.subr.mxu0 0.0
    %854 = vmatpush1.msra.mxu0 0.0
    %855 = vmatprep.subr.mxu0 0.0
    %856 = vmatpush1.msra.mxu0 0.0
    %857 = vmatprep.subr.mxu0 0.0
    %858 = vmatpush1.msra.mxu0 0.0
    %859 = vmatprep.subr.mxu0 0.0
    %860 = vmatpush1.msra.mxu0 0.0
    %861 = vmatprep.subr.mxu0 0.0
    %862 = vmatpush1.msra.mxu0 0.0
    %863 = vmatprep.subr.mxu0 0.0
    %864 = vmatpush1.msra.mxu0 0.0
    %865 = vmatprep.subr.mxu0 0.0
    %866 = vmatpush1.msra.mxu0 0.0
    %867 = vmatprep.subr.mxu0 0.0
    %868 = vmatpush1.msra.mxu0 0.0
    %869 = vmatprep.subr.mxu0 0.0
    %870 = vmatpush1.msra.mxu0 0.0
    %871 = vmatprep.mubr.f32.mxu0 0.0
    %v872 = vand.u32 %v502, 4294901760
    %873 = vmatmul.mubr.f32.gmra.mrb[0].mxu0 %v872
    %v874 = vpop.f32.mrb[0].mxu0
    %v875 = vadd.f32 %v801, %v874
    %v876 = vpop.f32.mrb[0].mxu0
    %877 = vdwg.mxu0
    %878 = vmatprep.subr.mxu0 0.0
    %v879 = vand.u32 %v43, 4294901760
    %880 = vmatpush1.msra.mxu0 %v879
    %881 = vmatprep.subr.mxu0 0.0
    %882 = vmatpush1.msra.mxu0 0.0
    %883 = vmatprep.subr.mxu0 0.0
    %884 = vmatpush1.msra.mxu0 0.0
    %885 = vmatprep.subr.mxu0 0.0
    %886 = vmatpush1.msra.mxu0 0.0
    %887 = vmatprep.subr.mxu0 0.0
    %888 = vmatpush1.msra.mxu0 0.0
    %889 = vmatprep.subr.mxu0 0.0
    %890 = vmatpush1.msra.mxu0 0.0
    %891 = vmatprep.subr.mxu0 0.0
    %892 = vmatpush1.msra.mxu0 0.0
    %893 = vmatprep.subr.mxu0 0.0
    %894 = vmatpush1.msra.mxu0 0.0
    %895 = vmatprep.subr.mxu0 0.0
    %896 = vmatpush1.msra.mxu0 0.0
    %897 = vmatprep.subr.mxu0 0.0
    %898 = vmatpush1.msra.mxu0 0.0
    %899 = vmatprep.subr.mxu0 0.0
    %900 = vmatpush1.msra.mxu0 0.0
    %901 = vmatprep.subr.mxu0 0.0
    %902 = vmatpush1.msra.mxu0 0.0
    %903 = vmatprep.subr.mxu0 0.0
    %904 = vmatpush1.msra.mxu0 0.0
    %905 = vmatprep.subr.mxu0 0.0
    %906 = vmatpush1.msra.mxu0 0.0
    %907 = vmatprep.subr.mxu0 0.0
    %908 = vmatpush1.msra.mxu0 0.0
    %909 = vmatprep.subr.mxu0 0.0
    %910 = vmatpush1.msra.mxu0 0.0
    %911 = vmatprep.subr.mxu0 0.0
    %912 = vmatpush1.msra.mxu0 0.0
    %913 = vmatprep.subr.mxu0 0.0
    %914 = vmatpush1.msra.mxu0 0.0
    %915 = vmatprep.subr.mxu0 0.0
    %916 = vmatpush1.msra.mxu0 0.0
    %917 = vmatprep.subr.mxu0 0.0
    %918 = vmatpush1.msra.mxu0 0.0
    %919 = vmatprep.subr.mxu0 0.0
    %920 = vmatpush1.msra.mxu0 0.0
    %921 = vmatprep.subr.mxu0 0.0
    %922 = vmatpush1.msra.mxu0 0.0
    %923 = vmatprep.subr.mxu0 0.0
    %924 = vmatpush1.msra.mxu0 0.0
    %925 = vmatprep.subr.mxu0 0.0
    %926 = vmatpush1.msra.mxu0 0.0
    %927 = vmatprep.subr.mxu0 0.0
    %928 = vmatpush1.msra.mxu0 0.0
    %929 = vmatprep.subr.mxu0 0.0
    %930 = vmatpush1.msra.mxu0 0.0
    %931 = vmatprep.subr.mxu0 0.0
    %932 = vmatpush1.msra.mxu0 0.0
    %933 = vmatprep.subr.mxu0 0.0
    %934 = vmatpush1.msra.mxu0 0.0
    %935 = vmatprep.subr.mxu0 0.0
    %936 = vmatpush1.msra.mxu0 0.0
    %937 = vmatprep.subr.mxu0 0.0
    %938 = vmatpush1.msra.mxu0 0.0
    %939 = vmatprep.subr.mxu0 0.0
    %940 = vmatpush1.msra.mxu0 0.0
    %941 = vmatprep.subr.mxu0 0.0
    %942 = vmatpush1.msra.mxu0 0.0
    %943 = vmatprep.mubr.f32.mxu0 0.0
    %v944 = vand.u32 %v502, 4294901760
    %945 = vmatmul.mubr.f32.gmra.mrb[0].mxu0 %v944
    %v946 = vpop.f32.mrb[0].mxu0
    %v947 = vadd.f32 %v875, %v946
    %v948 = vpop.f32.mrb[0].mxu0
    %949 = vdwg.mxu0
    %vm950 = vcmask 254976
    %951 = vst.msk [vmem:[#allocation7] sm:$0x3] %vm950, %v947
    // Predicated region
    $region26: #{tpu_custom_call.1} parent=1 // pred_check
      _
    $region27: #{tpu_custom_call.1} parent=1 // pred_check_branch
      %953 = sbr.rel (0) target = $region29
    $region28: #{tpu_custom_call.1} parent=1 // pred_region
      %s955 = ssub.s32 32, 32
      %956 = vsyncadd [#allocation4], %s955
      %s958 = sshll.u32 [#allocation7], 4
      %s959 = int_to_ptr.vmem [resolvable:$true] %s958
      %961 = dma.vmem_to_hbm [thread:$0]  %s959, 32, %s4, [#allocation4]
    $region29: #{tpu_custom_call.1} parent=1 // pred_fallthru
      _
    // Predicated region
    $region30: #{tpu_custom_call.1} parent=1 // pred_check
      _
    $region31: #{tpu_custom_call.1} parent=1 // pred_check_branch
      %963 = sbr.rel (0) target = $region33
    $region32: #{tpu_custom_call.1} parent=1 // pred_region
      %964 = dma.done [#allocation4], 32
    $region33: #{tpu_custom_call.1} parent=1 // pred_fallthru
      _
    %965 = vsyncpa [#allocation3], 1
    %966 = vsyncpa [#allocation6], 1
    %967 = vsyncpa [#allocation4], 1

</llo_original>
